<compile_context>
chip_gen: v5e
topology: v5e:2x2
jax: 0.10.0
libtpu: 0.0.40
codegen_flags: <defaults>
</compile_context>

<pallas_src>
import jax
import jax.numpy as jnp
from jax.experimental import pallas as pl
from jax.experimental.pallas import tpu as pltpu


def drop_sample_kernel(x_ref, scale_ref, o_ref):
    # x_ref / o_ref block: (nb, tile_d); scale_ref block: (nb, 1), f32.
    # scale already folds the keep-mask and the 1/(1-p) rescale.
    o_ref[...] = (x_ref[...] * scale_ref[...]).astype(o_ref.dtype)


def _choose_blocking(n, d, dtype, target_block_bytes):
    """Pick (nb, tile_d): dense sublane/lane blocks near the target byte size."""
    itemsize = jnp.dtype(dtype).itemsize
    pack = max(8, 32 // itemsize)            # sublane pack: 8 f32, 16 bf16, 32 i8
    target_elems = max(128 * pack, target_block_bytes // itemsize)

    # Lane tile: use the full D axis when it fits alongside >= pack samples
    # (full-dim blocks are always legal); otherwise a lane-aligned chunk.
    if d <= 128 or d * pack <= target_elems:
        tile_d = d
    else:
        tile_d = max(128, min(d, ((target_elems // pack) // 128) * 128))

    # Samples per block: fill the remaining budget, sublane-aligned (or == n).
    nb = max(1, target_elems // tile_d)
    if nb < n:
        nb = max(pack, (nb // pack) * pack)
    nb = min(nb, n)

    # Megacore: if the whole array would be a single grid step and the sample
    # axis can be split into dense halves, do so to give both TCs work.
    if nb == n and tile_d == d and n >= 2 * pack:
        nb = max(pack, ((n // 2) // pack) * pack)

    return nb, tile_d


def drop_sample(x, rand, p, *, training=True,
                target_block_bytes=4 * 1024 * 1024, donate=False):
    """DropSample forward. x: (N, C, H, W) (or any >=1-D); rand: (N,) uniforms."""
    # NOTE: p / training are expected to be Python scalars (module config).
    if (not p) or (not training):
        return x

    n = x.shape[0]
    d = 1
    for s in x.shape[1:]:
        d *= s

    x2 = x.reshape(n, d)
    # Per-sample gate: keep iff rand > p, rescale kept samples by 1/(1-p).
    # Kept in f32 so the multiply happens at full precision for low-bit dtypes.
    scale2 = ((rand > p).astype(jnp.float32) / (1.0 - p)).reshape(n, 1)

    nb, tile_d = _choose_blocking(n, d, x.dtype, target_block_bytes)
    grid = (pl.cdiv(n, nb), pl.cdiv(d, tile_d))

    out = pl.pallas_call(
        drop_sample_kernel,
        out_shape=jax.ShapeDtypeStruct((n, d), x.dtype),
        grid=grid,
        in_specs=[
            pl.BlockSpec((nb, tile_d), lambda i, j: (i, j)),  # x block
            pl.BlockSpec((nb, 1), lambda i, j: (i, 0)),       # per-sample scale
        ],
        out_specs=pl.BlockSpec((nb, tile_d), lambda i, j: (i, j)),
        input_output_aliases=({0: 0} if donate else {}),
        compiler_params=pltpu.CompilerParams(
            dimension_semantics=("parallel", "parallel"),
            vmem_limit_bytes=32 * 1024 * 1024,
        ),
    )(x2, scale2)

    return out.reshape(x.shape)


def drop_sample_ref(x, rand, p, training=True):
    """Pure-JAX reference matching the PyTorch module."""
    if (not p) or (not training):
        return x
    mask = (rand > p).astype(x.dtype).reshape((-1,) + (1,) * (x.ndim - 1))
    return (x / (1.0 - p)) * mask


if __name__ == "__main__":
    p = 0.5
    key = jax.random.PRNGKey(0)
    kx, kr, kx2, kr2 = jax.random.split(key, 4)

    # --- small shape from the module: (N, C, H, W) = (2, 4, 16, 16) ---
    x = jax.random.normal(kx, (2, 4, 16, 16), dtype=jnp.float32)
    rand = jax.random.uniform(kr, (2,), dtype=jnp.float32)

    ref = drop_sample_ref(x, rand, p, training=True)
    out = jax.block_until_ready(drop_sample(x, rand, p, training=True))
    assert out.shape == x.shape
    assert jnp.allclose(out, ref, atol=1e-6, rtol=1e-6), "mismatch vs reference"

    # Deterministic mask exercising both the keep and the drop branch.
    rand_fix = jnp.array([0.9, 0.1], dtype=jnp.float32)
    ref_fix = drop_sample_ref(x, rand_fix, p, training=True)
    out_fix = jax.block_until_ready(drop_sample(x, rand_fix, p, training=True))
    assert jnp.allclose(out_fix, ref_fix, atol=1e-6, rtol=1e-6), "mismatch (fixed mask)"

    # Eval mode / p == 0 are identity, matching the module's early return.
    assert jnp.array_equal(drop_sample(x, rand, p, training=False), x)
    assert jnp.array_equal(drop_sample(x, rand, 0.0, training=True), x)

    # --- ragged-grid path: cdiv tiling on both axes (N=10, D=3072, tiny blocks) ---
    xb = jax.random.normal(kx2, (10, 4, 32, 24), dtype=jnp.float32)
    rb = jax.random.uniform(kr2, (10,), dtype=jnp.float32)
    refb = drop_sample_ref(xb, rb, p, training=True)
    outb = jax.block_until_ready(
        drop_sample(xb, rb, p, training=True, target_block_bytes=32 * 1024))
    assert jnp.allclose(outb, refb, atol=1e-6, rtol=1e-6), "mismatch (ragged grid)"

    print("KERNEL_OK")
</pallas_src>

<mosaic_0001>
module attributes {stable_mosaic.version = 11 : i64} {
  func.func @drop_sample_kernel(%arg0: i32, %arg1: i32, %arg2: memref<2x1024xf32, #tpu.memory_space<vmem>>, %arg3: memref<2x1xf32, #tpu.memory_space<vmem>>, %arg4: memref<2x1024xf32, #tpu.memory_space<vmem>>) attributes {dimension_semantics = [#tpu.dimension_semantics<parallel>, #tpu.dimension_semantics<parallel>], iteration_bounds = array<i64: 1, 1>, scalar_prefetch = 0 : i64, scratch_operands = 0 : i64, tpu.core_type = #tpu.core_type<tc>, window_params = [{transform_indices = @transform_0, window_bounds = array<i64: 2, 1024>}, {transform_indices = @transform_1, window_bounds = array<i64: 2, 1>}, {transform_indices = @transform_2, window_bounds = array<i64: 2, 1024>}]} {
    %c0 = arith.constant 0 : index
    %c0_0 = arith.constant 0 : index
    %0 = vector.load %arg2[%c0, %c0_0] : memref<2x1024xf32, #tpu.memory_space<vmem>>, vector<2x1024xf32>
    %c0_1 = arith.constant 0 : index
    %c0_2 = arith.constant 0 : index
    %1 = vector.load %arg3[%c0_1, %c0_2] : memref<2x1xf32, #tpu.memory_space<vmem>>, vector<2x1xf32>
    %2 = vector.broadcast %1 : vector<2x1xf32> to vector<2x1024xf32>
    %3 = arith.mulf %0, %2 : vector<2x1024xf32>
    %c0_3 = arith.constant 0 : index
    %c0_4 = arith.constant 0 : index
    %4 = vector.load %arg4[%c0_3, %c0_4] : memref<2x1024xf32, #tpu.memory_space<vmem>>, vector<2x1024xf32>
    tpu.vector_store %arg4[%c0_3, %c0_4], %3 {strides = array<i32>} : memref<2x1024xf32, #tpu.memory_space<vmem>>, vector<2x1024xf32>,
    return
  }
  func.func @transform_0(%arg0: i32, %arg1: i32) -> (i32, i32) {
    %c0_i32 = arith.constant 0 : i32
    return %arg0, %arg1 : i32, i32
  }
  func.func @transform_1(%arg0: i32, %arg1: i32) -> (i32, i32) {
    %c0_i32 = arith.constant 0 : i32
    %c0_i32_0 = arith.constant 0 : i32
    return %arg0, %c0_i32 : i32, i32
  }
  func.func @transform_2(%arg0: i32, %arg1: i32) -> (i32, i32) {
    %c0_i32 = arith.constant 0 : i32
    return %arg0, %arg1 : i32, i32
  }
}

</mosaic_0001>

<llo_original>
// kernel: tpu_custom_call.1
$region0: #{tpu_custom_call.1}
  #allocation0 [shape = 'u32[]', space=smem, size = 0x4, offset = 0x4, fixed_abs, tag = 'smem constant byte address 0x4 - core index']
  #allocation1 [shape = 'u32[72,128]{1,0:T(1,128)}', space=vmem, size = 0x9000, scoped, tag = 'internal scratch']
  %s0 = inlined_call_operand.hbm [shape: f32[2,1024], index: 0, kind: input, shape index: {}]
  %s1 = inlined_call_operand.vmem [shape: f32[2,1], index: 1, kind: input, shape index: {}]
  %s2 = inlined_call_operand.hbm [shape: f32[2,1024], index: 2, kind: output, shape index: {}]
  %s3 = sld [smem:[#allocation0]]
  $region22: #{tpu_custom_call.1} parent=0
    _
  %s5 = ssub.s32 1, %s3
  %s6 = scalar_select 0, %s5, %s3
  $region1: #{tpu_custom_call.1} parent=0
    #allocation2 [shape = 'u8[8192]{0}', space=vmem, size = 0x2000, scoped, tag = 'input window, operand 0, single buffered']
    #allocation3 [shape = 's32[1]{0}', space=sflag, size = 0x4, scoped, tag = 'scoped memory for tpu_custom_call.1']
    #allocation4 [shape = 's32[1]{0}', space=sflag, size = 0x4, scoped, tag = 'scoped memory for tpu_custom_call.1']
    #allocation5 [shape = 'u8[8192]{0}', space=vmem, size = 0x2000, scoped, tag = 'output window, operand 0, single buffered']
    %7 = vsyncpa [#allocation3], 0
    %8 = vsyncpa [#allocation4], 0
    // Predicated region
    $region2: #{tpu_custom_call.1} parent=1 // pred_check
      _
    $region3: #{tpu_custom_call.1} parent=1 // pred_check_branch
      %10 = sbr.rel (0) target = $region5
    $region4: #{tpu_custom_call.1} parent=1 // pred_region
      %12 = vsyncadd [#allocation3], 0
      %s14 = sshll.u32 %s0, 4
      %s15 = int_to_ptr.hbm [resolvable:$true] %s14
      %s16 = sshll.u32 [#allocation2], 4
      %s17 = int_to_ptr.vmem [resolvable:$true] %s16
      %19 = dma.hbm_to_vmem [thread:$0]  %s15, 256, %s17, [#allocation3]
    $region5: #{tpu_custom_call.1} parent=1 // pred_fallthru
      _
    // Predicated region
    $region6: #{tpu_custom_call.1} parent=1 // pred_check
      _
    $region7: #{tpu_custom_call.1} parent=1 // pred_check_branch
      %21 = sbr.rel (0) target = $region9
    $region8: #{tpu_custom_call.1} parent=1 // pred_region
      _
    $region9: #{tpu_custom_call.1} parent=1 // pred_fallthru
      _
    // Predicated region
    $region10: #{tpu_custom_call.1} parent=1 // pred_check
      _
    $region11: #{tpu_custom_call.1} parent=1 // pred_check_branch
      %23 = sbr.rel (0) target = $region13
    $region12: #{tpu_custom_call.1} parent=1 // pred_region
      %25 = dma.done [#allocation3], 256
    $region13: #{tpu_custom_call.1} parent=1 // pred_fallthru
      _
    %v26 = vld [vmem:[#allocation2] sm:$0xff]
    %v27 = vld [vmem:[#allocation2 + $0x8] sm:$0xff]
    %v28 = vld [vmem:[%s1] sm:$0x3]
    %30 = vset.pattern.permute.xlu0 0
    %31 = vperm.xlu0 %30, %v28
    %v32 = vpop.permute.xlu0 %31
    %v34 = vunpack.c.l.s4 269488144
    %v35 = vunpack.c.0.s8 %v34
    %v36 = vperm.slane %v32, %v35
    %v38 = vmul.f32 %v26, %v36
    %v39 = vmul.f32 %v27, %v36
    %40 = vst [vmem:[#allocation5] sm:$0xff] %v38
    %41 = vst [vmem:[#allocation5 + $0x8] sm:$0xff] %v39
    // Predicated region
    $region14: #{tpu_custom_call.1} parent=1 // pred_check
      _
    $region15: #{tpu_custom_call.1} parent=1 // pred_check_branch
      %43 = sbr.rel (0) target = $region17
    $region16: #{tpu_custom_call.1} parent=1 // pred_region
      %45 = vsyncadd [#allocation4], 0
      %s47 = sshll.u32 [#allocation5], 4
      %s48 = int_to_ptr.vmem [resolvable:$true] %s47
      %s49 = sshll.u32 %s2, 4
      %s50 = int_to_ptr.hbm [resolvable:$true] %s49
      %52 = dma.vmem_to_hbm [thread:$0]  %s48, 256, %s50, [#allocation4]
    $region17: #{tpu_custom_call.1} parent=1 // pred_fallthru
      _
    // Predicated region
    $region18: #{tpu_custom_call.1} parent=1 // pred_check
      _
    $region19: #{tpu_custom_call.1} parent=1 // pred_check_branch
      %54 = sbr.rel (0) target = $region21
    $region20: #{tpu_custom_call.1} parent=1 // pred_region
      %56 = dma.done [#allocation4], 256
    $region21: #{tpu_custom_call.1} parent=1 // pred_fallthru
      _
    %57 = vsyncpa [#allocation3], 1
    %58 = vsyncpa [#allocation4], 1

</llo_original>
